<compile_context>
chip_gen: v5e
topology: v5e:2x2
jax: 0.10.0
libtpu: 0.0.40
codegen_flags: <defaults>
</compile_context>

<pallas_src>
import math

import jax
import jax.numpy as jnp
from jax.experimental import pallas as pl
from jax.experimental.pallas import tpu as pltpu


# ---------------------------------------------------------------------------
# Mask sampling (tiny [B, total_blocks] array -> plain JAX, no kernel needed)
# ---------------------------------------------------------------------------
def sample_block_mask(key, batch: int, total_blocks: int, p: float):
    """Bernoulli(1-p) * 1/(1-p) mask, values in {0, 1/(1-p)}, f32."""
    keep_prob = 1.0 - p
    if keep_prob <= 0.0:            # p == 1: everything dropped (avoid inf scale)
        return jnp.zeros((batch, total_blocks), jnp.float32)
    if keep_prob >= 1.0:            # p == 0: keep everything, scale == 1
        return jnp.ones((batch, total_blocks), jnp.float32)
    keep = jax.random.bernoulli(key, p=keep_prob, shape=(batch, total_blocks))
    return keep.astype(jnp.float32) * jnp.float32(1.0 / keep_prob)


# ---------------------------------------------------------------------------
# Pallas apply kernel: x[B*C, HW] * mask[B*C, 1]  (f32 compute, lane broadcast)
# ---------------------------------------------------------------------------
def _apply_kernel(x_ref, m_ref, o_ref):
    xv = x_ref[...].astype(jnp.float32)          # (tr, tl)
    mv = m_ref[...]                              # (tr, 1)  f32, free lane bcast
    o_ref[...] = (xv * mv).astype(o_ref.dtype)


def _row_base(dtype) -> int:
    """Min sublane tile for the dtype (sub-32-bit packs along sublanes)."""
    itemsize = jnp.dtype(dtype).itemsize
    if itemsize >= 4:
        return 8
    if itemsize == 2:
        return 16
    return 32


def _pick_tile(dim: int, base: int, cap: int) -> int:
    """dim rounded up to a multiple of `base`, capped at `cap` (cap % base == 0).
    Ragged edges are handled by the cdiv grid + Pallas edge-block masking."""
    padded = ((dim + base - 1) // base) * base
    return int(min(cap, padded))


def apply_block_mask(x, mask_mod):
    """x: [B, C, *spatial], mask_mod: [B, C] (f32) -> x * mask (broadcast)."""
    B, C = int(x.shape[0]), int(x.shape[1])
    hw = int(math.prod(x.shape[2:])) if x.ndim > 2 else 1
    R = B * C
    x_bytes = jnp.dtype(x.dtype).itemsize

    # Lane-sparse output (< 128 lanes): Pallas would emit masked vst.msk
    # partial stores and the launch overhead dominates for such small blocks.
    # XLA's fused broadcast-multiply is already at roofline here.
    if hw < 128:
        m = mask_mod.astype(jnp.float32).reshape((B, C) + (1,) * (x.ndim - 2))
        return (x.astype(jnp.float32) * m).astype(x.dtype)

    x2 = x.reshape(R, hw)
    m2 = mask_mod.astype(jnp.float32).reshape(R, 1)

    # Tiles: ~4 MiB f32 max per block (512 x 2048); dtype-aware row base.
    tr = _pick_tile(R, _row_base(x.dtype), 512)
    tl = _pick_tile(hw, 128, 2048)

    # If the whole tensor fits one block but is big enough to matter, split the
    # lane axis so both v7x TensorCores get a block on a "parallel" axis.
    if (pl.cdiv(R, tr) == 1 and pl.cdiv(hw, tl) == 1
            and R * hw * x_bytes >= (2 << 20) and tl >= 256):
        tl = max(128, ((tl // 2 + 127) // 128) * 128)

    grid = (pl.cdiv(R, tr), pl.cdiv(hw, tl))

    # Explicit scoped-VMEM budget: double-buffered in + out + mask + margin.
    in_block = tr * tl * x_bytes
    out_block = tr * tl * x_bytes
    mask_block = tr * 128 * 4            # (tr, 1) f32 pads to a 128-lane tile
    vmem_limit = max(16 << 20, 2 * (in_block + out_block + mask_block) + (4 << 20))

    out = pl.pallas_call(
        _apply_kernel,
        out_shape=jax.ShapeDtypeStruct((R, hw), x.dtype),
        grid=grid,
        in_specs=[
            pl.BlockSpec((tr, tl), lambda r, l: (r, l)),
            pl.BlockSpec((tr, 1), lambda r, l: (r, 0)),
        ],
        out_specs=pl.BlockSpec((tr, tl), lambda r, l: (r, l)),
        compiler_params=pltpu.CompilerParams(
            dimension_semantics=("parallel", "parallel"),
            vmem_limit_bytes=int(vmem_limit)),
    )(x2, m2)
    return out.reshape(x.shape)


# ---------------------------------------------------------------------------
# Forward pass: JAX/Pallas port of MASF.BlockDropout.forward
# ---------------------------------------------------------------------------
def block_dropout(X, p: float = 0.5, training: bool = True, rng=None):
    """X: list of arrays, each [B, C_mod, ...spatial].

    Returns (masked_X, grouped_masks) in training mode, (X, None) otherwise.
    `rng` (a jax.random key or int seed) is required in training mode.
    """
    if p < 0 or p > 1:
        raise ValueError(
            "dropout probability has to be between 0 and 1, but got {}".format(p))
    if not training:
        return X, None

    if rng is None:
        raise ValueError("block_dropout requires a fresh `rng` key per step "
                         "in training mode.")
    if isinstance(rng, int):
        rng = jax.random.PRNGKey(rng)

    blocks_per_mod = [int(x.shape[1]) for x in X]
    batch = int(X[0].shape[0])
    total = sum(blocks_per_mod)

    # One shared mask over the concatenated block axis (matches torch.split).
    mask = sample_block_mask(rng, batch, total, p)   # [B, total], {0, 1/(1-p)}

    out, grouped_masks = [], []
    offset = 0
    for x, c in zip(X, blocks_per_mod):
        m = jax.lax.slice(mask, (0, offset), (batch, offset + c))   # [B, c] f32
        offset += c
        out.append(apply_block_mask(x, m))
        grouped_masks.append(m.reshape((batch, c) + (1,) * (x.ndim - 2)))
    return out, grouped_masks


if __name__ == "__main__":
    key = jax.random.PRNGKey(0)
    k1, k2, k3, k4, kdrop = jax.random.split(key, 5)
    # Modalities with different channel counts / spatial sizes (NCHW):
    x1 = jax.random.normal(k1, (2, 4, 16, 16), dtype=jnp.float32)   # hw=256 -> Pallas
    x2 = jax.random.normal(k2, (2, 6, 16, 8), dtype=jnp.float32)    # hw=128 -> Pallas
    x3 = jax.random.normal(k3, (2, 3, 8, 8), dtype=jnp.float32)     # hw=64  -> XLA fallback
    x4 = jax.random.normal(k4, (2, 8, 16, 16)).astype(jnp.bfloat16) # bf16 row-base path

    p = 0.5
    ys, ms = block_dropout([x1, x2, x3, x4], p=p, training=True, rng=kdrop)
    (y1, y2, y3, y4), (m1, m2, m3, m4) = ys, ms
    for y in ys:
        jax.block_until_ready(y)

    # Sanity checks: mask values are {0, 1/(1-p)} and outputs match x * mask.
    scale = 1.0 / (1.0 - p)
    for m in (m1, m2, m3, m4):
        vals = jnp.unique(m.reshape(-1))
        assert bool(jnp.all((vals == 0.0) | (jnp.abs(vals - scale) < 1e-6)))
    assert jnp.allclose(y1, x1 * m1, atol=1e-6)
    assert jnp.allclose(y2, x2 * m2, atol=1e-6)
    assert jnp.allclose(y3, x3 * m3, atol=1e-6)
    ref4 = (x4.astype(jnp.float32) * m4).astype(jnp.bfloat16)
    assert jnp.allclose(y4.astype(jnp.float32), ref4.astype(jnp.float32), atol=1e-2)
    assert m1.shape == (2, 4, 1, 1) and m2.shape == (2, 6, 1, 1)
    assert m3.shape == (2, 3, 1, 1) and m4.shape == (2, 8, 1, 1)

    # Eval mode passes through untouched.
    zs, nomask = block_dropout([x1, x2], p=p, training=False)
    assert nomask is None and zs[0] is x1 and zs[1] is x2

    print("KERNEL_OK")
</pallas_src>

<mosaic_0001>
module attributes {stable_mosaic.version = 11 : i64} {
  func.func @_apply_kernel(%arg0: i32, %arg1: i32, %arg2: memref<8x256xf32, #tpu.memory_space<vmem>>, %arg3: memref<8x1xf32, #tpu.memory_space<vmem>>, %arg4: memref<8x256xf32, #tpu.memory_space<vmem>>) attributes {dimension_semantics = [#tpu.dimension_semantics<parallel>, #tpu.dimension_semantics<parallel>], iteration_bounds = array<i64: 1, 1>, scalar_prefetch = 0 : i64, scratch_operands = 0 : i64, tpu.core_type = #tpu.core_type<tc>, window_params = [{transform_indices = @transform_0, window_bounds = array<i64: 8, 256>}, {transform_indices = @transform_1, window_bounds = array<i64: 8, 1>}, {transform_indices = @transform_2, window_bounds = array<i64: 8, 256>}]} {
    %c0 = arith.constant 0 : index
    %c0_0 = arith.constant 0 : index
    %0 = vector.load %arg2[%c0, %c0_0] : memref<8x256xf32, #tpu.memory_space<vmem>>, vector<8x256xf32>
    %c0_1 = arith.constant 0 : index
    %c0_2 = arith.constant 0 : index
    %1 = vector.load %arg3[%c0_1, %c0_2] : memref<8x1xf32, #tpu.memory_space<vmem>>, vector<8x1xf32>
    %2 = vector.broadcast %1 : vector<8x1xf32> to vector<8x256xf32>
    %3 = arith.mulf %0, %2 : vector<8x256xf32>
    %c0_3 = arith.constant 0 : index
    %c0_4 = arith.constant 0 : index
    %4 = vector.load %arg4[%c0_3, %c0_4] : memref<8x256xf32, #tpu.memory_space<vmem>>, vector<8x256xf32>
    tpu.vector_store %arg4[%c0_3, %c0_4], %3 {strides = array<i32>} : memref<8x256xf32, #tpu.memory_space<vmem>>, vector<8x256xf32>,
    return
  }
  func.func @transform_0(%arg0: i32, %arg1: i32) -> (i32, i32) {
    %c0_i32 = arith.constant 0 : i32
    return %arg0, %arg1 : i32, i32
  }
  func.func @transform_1(%arg0: i32, %arg1: i32) -> (i32, i32) {
    %c0_i32 = arith.constant 0 : i32
    %c0_i32_0 = arith.constant 0 : i32
    return %arg0, %c0_i32 : i32, i32
  }
  func.func @transform_2(%arg0: i32, %arg1: i32) -> (i32, i32) {
    %c0_i32 = arith.constant 0 : i32
    return %arg0, %arg1 : i32, i32
  }
}

</mosaic_0001>

<llo_original>
// kernel: tpu_custom_call.1
$region0: #{tpu_custom_call.1}
  #allocation0 [shape = 'u32[]', space=smem, size = 0x4, offset = 0x4, fixed_abs, tag = 'smem constant byte address 0x4 - core index']
  #allocation1 [shape = 'u32[72,128]{1,0:T(1,128)}', space=vmem, size = 0x9000, scoped, tag = 'internal scratch']
  %s0 = inlined_call_operand.hbm [shape: f32[8,256], index: 0, kind: input, shape index: {}]
  %s1 = inlined_call_operand.vmem [shape: f32[8,1], index: 1, kind: input, shape index: {}]
  %s2 = inlined_call_operand.hbm [shape: f32[8,256], index: 2, kind: output, shape index: {}]
  %s3 = sld [smem:[#allocation0]]
  $region22: #{tpu_custom_call.1} parent=0
    _
  %s5 = ssub.s32 1, %s3
  %s6 = scalar_select 0, %s5, %s3
  $region1: #{tpu_custom_call.1} parent=0
    #allocation2 [shape = 'u8[8192]{0}', space=vmem, size = 0x2000, scoped, tag = 'input window, operand 0, single buffered']
    #allocation3 [shape = 's32[1]{0}', space=sflag, size = 0x4, scoped, tag = 'scoped memory for tpu_custom_call.1']
    #allocation4 [shape = 's32[1]{0}', space=sflag, size = 0x4, scoped, tag = 'scoped memory for tpu_custom_call.1']
    #allocation5 [shape = 'u8[8192]{0}', space=vmem, size = 0x2000, scoped, tag = 'output window, operand 0, single buffered']
    %7 = vsyncpa [#allocation3], 0
    %8 = vsyncpa [#allocation4], 0
    // Predicated region
    $region2: #{tpu_custom_call.1} parent=1 // pred_check
      _
    $region3: #{tpu_custom_call.1} parent=1 // pred_check_branch
      %10 = sbr.rel (0) target = $region5
    $region4: #{tpu_custom_call.1} parent=1 // pred_region
      %12 = vsyncadd [#allocation3], 0
      %s14 = sshll.u32 %s0, 4
      %s15 = int_to_ptr.hbm [resolvable:$true] %s14
      %s16 = sshll.u32 [#allocation2], 4
      %s17 = int_to_ptr.vmem [resolvable:$true] %s16
      %19 = dma.hbm_to_vmem [thread:$0]  %s15, 256, %s17, [#allocation3]
    $region5: #{tpu_custom_call.1} parent=1 // pred_fallthru
      _
    // Predicated region
    $region6: #{tpu_custom_call.1} parent=1 // pred_check
      _
    $region7: #{tpu_custom_call.1} parent=1 // pred_check_branch
      %21 = sbr.rel (0) target = $region9
    $region8: #{tpu_custom_call.1} parent=1 // pred_region
      _
    $region9: #{tpu_custom_call.1} parent=1 // pred_fallthru
      _
    // Predicated region
    $region10: #{tpu_custom_call.1} parent=1 // pred_check
      _
    $region11: #{tpu_custom_call.1} parent=1 // pred_check_branch
      %23 = sbr.rel (0) target = $region13
    $region12: #{tpu_custom_call.1} parent=1 // pred_region
      %25 = dma.done [#allocation3], 256
    $region13: #{tpu_custom_call.1} parent=1 // pred_fallthru
      _
    %v26 = vld [vmem:[#allocation2] sm:$0xff]
    %v27 = vld [vmem:[#allocation2 + $0x8] sm:$0xff]
    %v28 = vld [vmem:[%s1] sm:$0xff]
    %30 = vset.pattern.permute.xlu0 0
    %31 = vperm.xlu0 %30, %v28
    %v32 = vpop.permute.xlu0 %31
    %v34 = vmul.f32 %v26, %v32
    %v35 = vmul.f32 %v27, %v32
    %36 = vst [vmem:[#allocation5] sm:$0xff] %v34
    %37 = vst [vmem:[#allocation5 + $0x8] sm:$0xff] %v35
    // Predicated region
    $region14: #{tpu_custom_call.1} parent=1 // pred_check
      _
    $region15: #{tpu_custom_call.1} parent=1 // pred_check_branch
      %39 = sbr.rel (0) target = $region17
    $region16: #{tpu_custom_call.1} parent=1 // pred_region
      %41 = vsyncadd [#allocation4], 0
      %s43 = sshll.u32 [#allocation5], 4
      %s44 = int_to_ptr.vmem [resolvable:$true] %s43
      %s45 = sshll.u32 %s2, 4
      %s46 = int_to_ptr.hbm [resolvable:$true] %s45
      %48 = dma.vmem_to_hbm [thread:$0]  %s44, 256, %s46, [#allocation4]
    $region17: #{tpu_custom_call.1} parent=1 // pred_fallthru
      _
    // Predicated region
    $region18: #{tpu_custom_call.1} parent=1 // pred_check
      _
    $region19: #{tpu_custom_call.1} parent=1 // pred_check_branch
      %50 = sbr.rel (0) target = $region21
    $region20: #{tpu_custom_call.1} parent=1 // pred_region
      %52 = dma.done [#allocation4], 256
    $region21: #{tpu_custom_call.1} parent=1 // pred_fallthru
      _
    %53 = vsyncpa [#allocation3], 1
    %54 = vsyncpa [#allocation4], 1

</llo_original>
